<compile_context>
chip_gen: v7x
topology: tpu7x:2x2x1
jax: 0.10.0
libtpu: 0.0.40
codegen_flags: <defaults>
</compile_context>

<pallas_src>
import functools

import jax
import jax.numpy as jnp
from jax import lax
from jax.experimental import pallas as pl
from jax.experimental.pallas import tpu as pltpu

LANES = 128
ACC_ROWS = 8                       # vreg sublane count; partial-sum shape (8, 128)
ROW_ALIGN = 32                     # covers f32 (8), bf16 (16) and int8/bool (32) tiling
MAX_TILE_ROWS = 8192               # 8192 x 128 x 4B = 4 MiB per f32 stream per buffer
VMEM_LIMIT_BYTES = 40 * 1024 * 1024


def _round_up(x, m):
    return ((x + m - 1) // m) * m


def _smape_kernel(*refs, tile_rows, tail_rows, has_mask):
    if has_mask:
        f_ref, t_ref, m_ref, o_ref = refs
    else:
        f_ref, t_ref, o_ref = refs
        m_ref = None

    i = pl.program_id(0)

    @pl.when(i == 0)
    def _():
        o_ref[...] = jnp.zeros_like(o_ref)

    f = f_ref[...].astype(jnp.float32)
    t = t_ref[...].astype(jnp.float32)
    num = jnp.abs(f - t)
    den = jnp.abs(f) + jnp.abs(t)
    r = num / den
    # divide_no_nan: num, den >= 0, so NaN (0/0) and +inf are the only bad cases.
    ratio = jnp.where(jnp.isfinite(r), r, 0.0)

    if has_mask:
        # Native narrow-dtype mask stream; the cast+mul is cheap VPU work
        # hidden under DMA (multiply keeps exact semantics for float masks).
        ratio = ratio * m_ref[...].astype(jnp.float32)

    def _accum(x):
        # VPU-only partial sum into the resident (8, 128) output block:
        # pure leading-dim split (free) + adds; no cross-lane reduce here.
        o_ref[...] += x.reshape(tile_rows // ACC_ROWS, ACC_ROWS, LANES).sum(axis=0)

    if tail_rows:
        # Only the last grid step has a ragged tail (rows >= tail_rows are the
        # unspecified padding of the partial edge block) -> zero them.
        last = pl.num_programs(0) - 1

        @pl.when(i != last)
        def _():
            _accum(ratio)

        @pl.when(i == last)
        def _():
            row = lax.broadcasted_iota(jnp.int32, ratio.shape, 0)
            _accum(jnp.where(row < tail_rows, ratio, 0.0))
    else:
        _accum(ratio)


def _as_rows(x, pad_rows):
    """Flatten to (pad_rows, 128) in native dtype; zero-pad only if needed."""
    flat = x.reshape(-1)
    pad = pad_rows * LANES - flat.size
    if pad:
        flat = jnp.pad(flat, (0, pad))  # zeros contribute 0 on every path
    return flat.reshape(pad_rows, LANES)


def smape_loss(forecast, target, mask=None, *, max_tile_rows=MAX_TILE_ROWS):
    """200 * mean(divide_no_nan(|f - t|, |f| + |t|) * mask); scalar output."""
    n = forecast.size  # mean is over ALL elements, independent of mask

    # Balanced row tiling: keeps padding / ragged tails small regardless of n.
    flat_rows = pl.cdiv(n, LANES)
    num_tiles = pl.cdiv(flat_rows, max_tile_rows)
    tile_rows = _round_up(pl.cdiv(flat_rows, num_tiles), ROW_ALIGN)

    # Multi-tile: keep exactly flat_rows rows (ragged tail masked in-kernel,
    # no full-array pad copy).  Single small tile: pad rows up to the tile
    # (array is at most ~4 MiB, cost negligible, block stays aligned).
    pad_rows = tile_rows if tile_rows >= flat_rows else flat_rows
    grid_rows = pl.cdiv(pad_rows, tile_rows)
    tail_rows = pad_rows % tile_rows  # 0 => every block fully valid

    f2 = _as_rows(forecast, pad_rows)
    t2 = _as_rows(target, pad_rows)

    in_spec = pl.BlockSpec((tile_rows, LANES), lambda i: (i, 0))
    operands = [f2, t2]
    in_specs = [in_spec, in_spec]

    has_mask = mask is not None
    if has_mask:
        if mask.dtype == jnp.bool_:
            # 1-byte stream either way; int8 avoids i1 lowering corner cases.
            mask = mask.astype(jnp.int8)
        operands.append(_as_rows(mask, pad_rows))
        in_specs.append(in_spec)

    kernel = functools.partial(
        _smape_kernel,
        tile_rows=tile_rows,
        tail_rows=tail_rows,
        has_mask=has_mask,
    )

    partial = pl.pallas_call(
        kernel,
        out_shape=jax.ShapeDtypeStruct((ACC_ROWS, LANES), jnp.float32),
        grid_spec=pltpu.PrefetchScalarGridSpec(
            num_scalar_prefetch=0,
            grid=(grid_rows,),
            in_specs=in_specs,
            out_specs=pl.BlockSpec((ACC_ROWS, LANES), lambda i: (0, 0)),
        ),
        compiler_params=pltpu.CompilerParams(
            dimension_semantics=("arbitrary",),
            vmem_limit_bytes=VMEM_LIMIT_BYTES,
        ),
    )(*operands)

    # Tiny epilogue on 1 KiB of data: cross-lane reduce + 200/N scale.
    return (200.0 / n) * jnp.sum(partial)


if __name__ == "__main__":
    def ref_smape(f, t, m=None):
        f32 = f.astype(jnp.float32)
        t32 = t.astype(jnp.float32)
        num = jnp.abs(f32 - t32)
        den = jnp.abs(f32) + jnp.abs(t32)
        r = num / den
        r = jnp.where(jnp.isfinite(r), r, 0.0)
        if m is not None:
            r = r * m.astype(jnp.float32)
        return 200.0 * jnp.mean(r)

    key = jax.random.PRNGKey(0)
    k1, k2, k3 = jax.random.split(key, 3)

    # [batch, time, features] as in the module docstring.
    B, T, F = 2, 8, 32
    forecast = jax.random.normal(k1, (B, T, F), dtype=jnp.float32)
    target = jax.random.normal(k2, (B, T, F), dtype=jnp.float32)
    # Exercise the 0/0 -> 0 divide_no_nan path.
    forecast = forecast.at[0, 0, :4].set(0.0)
    target = target.at[0, 0, :4].set(0.0)

    checks = []

    # 1) no mask
    checks.append((smape_loss(forecast, target), ref_smape(forecast, target)))

    # 2) float 0/1 mask (weighted-multiply path)
    mask_f32 = (jax.random.uniform(k3, (B, T, F)) > 0.3).astype(jnp.float32)
    checks.append((smape_loss(forecast, target, mask_f32),
                   ref_smape(forecast, target, mask_f32)))

    # 3) narrow int8 mask (1 byte/elem HBM stream)
    mask_i8 = mask_f32.astype(jnp.int8)
    checks.append((smape_loss(forecast, target, mask_i8),
                   ref_smape(forecast, target, mask_i8)))

    # 4) multi-tile grid with a ragged row tail (in-kernel tail masking),
    #    forced via a small max_tile_rows so shapes stay small.
    B2, T2, F2 = 2, 70, 64   # 8960 elems = 70 rows of 128 (no lane pad)
    f_big = jax.random.normal(k1, (B2, T2, F2), dtype=jnp.float32)
    t_big = jax.random.normal(k2, (B2, T2, F2), dtype=jnp.float32)
    checks.append((smape_loss(f_big, t_big, max_tile_rows=32),
                   ref_smape(f_big, t_big)))
    m_big = (jax.random.uniform(k3, (B2, T2, F2)) > 0.5).astype(jnp.int8)
    checks.append((smape_loss(f_big, t_big, m_big, max_tile_rows=32),
                   ref_smape(f_big, t_big, m_big)))

    # 5) lane-ragged element count (<128-elem remainder pad path)
    f_odd = jax.random.normal(k1, (2, 8, 33), dtype=jnp.float32)
    t_odd = jax.random.normal(k2, (2, 8, 33), dtype=jnp.float32)
    checks.append((smape_loss(f_odd, t_odd), ref_smape(f_odd, t_odd)))

    for got, want in checks:
        got = jax.block_until_ready(got)
        assert jnp.allclose(got, want, rtol=1e-5, atol=1e-5), (got, want)

    print("KERNEL_OK")
</pallas_src>

<mosaic_0001>
module attributes {stable_mosaic.version = 11 : i64} {
  func.func @_smape_kernel(%arg0: i32, %arg1: memref<32x128xf32, #tpu.memory_space<vmem>>, %arg2: memref<32x128xf32, #tpu.memory_space<vmem>>, %arg3: memref<8x128xf32, #tpu.memory_space<vmem>>) attributes {dimension_semantics = [#tpu.dimension_semantics<arbitrary>], iteration_bounds = array<i64: 1>, scalar_prefetch = 0 : i64, scratch_operands = 0 : i64, tpu.core_type = #tpu.core_type<tc>, window_params = [{transform_indices = @transform_0, window_bounds = array<i64: 32, 128>}, {transform_indices = @transform_1, window_bounds = array<i64: 32, 128>}, {pipeline_mode = #tpu.pipeline_mode<synchronous>, transform_indices = @transform_2, window_bounds = array<i64: 8, 128>}]} {
    %c0_i32 = arith.constant 0 : i32
    %0 = arith.cmpi eq, %arg0, %c0_i32 : i32
    %1 = arith.extui %0 : i1 to i32
    %c0_i32_0 = arith.constant 0 : i32
    %2 = arith.cmpi ne, %1, %c0_i32_0 : i32
    scf.if %2 {
      %cst_10 = arith.constant 0.000000e+00 : f32
      %20 = vector.broadcast %cst_10 : f32 to vector<8x128xf32>
      %c0_11 = arith.constant 0 : index
      %c0_12 = arith.constant 0 : index
      %21 = vector.load %arg3[%c0_11, %c0_12] : memref<8x128xf32, #tpu.memory_space<vmem>>, vector<8x128xf32>
      tpu.vector_store %arg3[%c0_11, %c0_12], %20 {strides = array<i32>} : memref<8x128xf32, #tpu.memory_space<vmem>>, vector<8x128xf32>,
    } else {
    }
    %c0 = arith.constant 0 : index
    %c0_1 = arith.constant 0 : index
    %3 = vector.load %arg1[%c0, %c0_1] : memref<32x128xf32, #tpu.memory_space<vmem>>, vector<32x128xf32>
    %c0_2 = arith.constant 0 : index
    %c0_3 = arith.constant 0 : index
    %4 = vector.load %arg2[%c0_2, %c0_3] : memref<32x128xf32, #tpu.memory_space<vmem>>, vector<32x128xf32>
    %5 = arith.subf %3, %4 : vector<32x128xf32>
    %6 = math.absf %5 : vector<32x128xf32>
    %7 = math.absf %3 : vector<32x128xf32>
    %8 = math.absf %4 : vector<32x128xf32>
    %9 = arith.addf %7, %8 : vector<32x128xf32>
    %10 = arith.divf %6, %9 : vector<32x128xf32>
    %11 = tpu.weird %10 : vector<32x128xf32> -> vector<32x128xi1>
    %cst = arith.constant dense<true> : vector<32x128xi1>
    %12 = arith.xori %11, %cst : vector<32x128xi1>
    %cst_4 = arith.constant 0.000000e+00 : f32
    %13 = vector.broadcast %cst_4 : f32 to vector<32x128xf32>
    %14 = arith.select %12, %10, %13 : vector<32x128xi1>, vector<32x128xf32>
    %c0_5 = arith.constant 0 : index
    %c0_6 = arith.constant 0 : index
    %15 = vector.load %arg3[%c0_5, %c0_6] : memref<8x128xf32, #tpu.memory_space<vmem>>, vector<8x128xf32>
    %16 = vector.shape_cast %14 : vector<32x128xf32> to vector<4x8x128xf32>
    %cst_7 = arith.constant dense<0.000000e+00> : vector<8x128xf32>
    %17 = vector.multi_reduction <add>, %16, %cst_7 [0] : vector<4x8x128xf32> to vector<8x128xf32>
    %18 = arith.addf %15, %17 : vector<8x128xf32>
    %c0_8 = arith.constant 0 : index
    %c0_9 = arith.constant 0 : index
    %19 = vector.load %arg3[%c0_8, %c0_9] : memref<8x128xf32, #tpu.memory_space<vmem>>, vector<8x128xf32>
    tpu.vector_store %arg3[%c0_8, %c0_9], %18 {strides = array<i32>} : memref<8x128xf32, #tpu.memory_space<vmem>>, vector<8x128xf32>,
    return
  }
  func.func @transform_0(%arg0: i32) -> (i32, i32) {
    %c0_i32 = arith.constant 0 : i32
    %c0_i32_0 = arith.constant 0 : i32
    return %arg0, %c0_i32 : i32, i32
  }
  func.func @transform_1(%arg0: i32) -> (i32, i32) {
    %c0_i32 = arith.constant 0 : i32
    %c0_i32_0 = arith.constant 0 : i32
    return %arg0, %c0_i32 : i32, i32
  }
  func.func @transform_2(%arg0: i32) -> (i32, i32) {
    %c0_i32 = arith.constant 0 : i32
    %c0_i32_0 = arith.constant 0 : i32
    %c0_i32_1 = arith.constant 0 : i32
    return %c0_i32, %c0_i32_0 : i32, i32
  }
}

</mosaic_0001>

<llo_original>
// kernel: tpu_custom_call.1
$region0: #{tpu_custom_call.1}
  #allocation0 [shape = 'u32[]', space=smem, size = 0x4, offset = 0x4, fixed_abs, tag = 'smem constant byte address 0x4 - core index']
  #allocation1 [shape = 'u32[144,128]{1,0:T(1,128)}', space=vmem, size = 0x12000, scoped, tag = 'internal scratch']
  %s0 = inlined_call_operand.hbm [shape: f32[32,128], index: 0, kind: input, shape index: {}]
  %s1 = inlined_call_operand.hbm [shape: f32[32,128], index: 1, kind: input, shape index: {}]
  %s2 = inlined_call_operand.hbm [shape: f32[8,128], index: 2, kind: output, shape index: {}]
  %s3 = sld [smem:[#allocation0]]
  $region30: #{tpu_custom_call.1} parent=0
    _
  %s5 = ssub.s32 1, %s3
  %s6 = scalar_select 0, %s5, %s3
  $region1: #{tpu_custom_call.1} parent=0
    #allocation2 [shape = 'u8[16384]{0}', space=vmem, size = 0x4000, scoped, tag = 'input window, operand 0, single buffered']
    #allocation3 [shape = 's32[1]{0}', space=sflag, size = 0x4, scoped, tag = 'scoped memory for tpu_custom_call.1']
    #allocation4 [shape = 's32[1]{0}', space=sflag, size = 0x4, scoped, tag = 'scoped memory for tpu_custom_call.1']
    #allocation5 [shape = 'u8[16384]{0}', space=vmem, size = 0x4000, scoped, tag = 'input window, operand 1, single buffered']
    #allocation6 [shape = 's32[1]{0}', space=sflag, size = 0x4, scoped, tag = 'scoped memory for tpu_custom_call.1']
    #allocation7 [shape = 'u8[4096]{0}', space=vmem, size = 0x1000, scoped, tag = 'output window, operand 0, single buffered']
    %7 = vsyncpa [#allocation3], 0
    %8 = vsyncpa [#allocation6], 0
    %9 = vsyncpa [#allocation4], 0
    // Predicated region
    $region2: #{tpu_custom_call.1} parent=1 // pred_check
      _
    $region3: #{tpu_custom_call.1} parent=1 // pred_check_branch
      %11 = sbr.rel (0) target = $region5
    $region4: #{tpu_custom_call.1} parent=1 // pred_region
      %s13 = ssub.s32 512, 512
      %14 = vsyncadd [#allocation3], %s13
      %s15 = sshll.u32 [#allocation2], 4
      %s16 = int_to_ptr.vmem [resolvable:$true] %s15
      %21 = dma.hbm_to_vmem [thread:$0]  %s0, 512, %s16, [#allocation3], 128, 128, 8
    $region5: #{tpu_custom_call.1} parent=1 // pred_fallthru
      _
    // Predicated region
    $region6: #{tpu_custom_call.1} parent=1 // pred_check
      _
    $region7: #{tpu_custom_call.1} parent=1 // pred_check_branch
      %23 = sbr.rel (0) target = $region9
    $region8: #{tpu_custom_call.1} parent=1 // pred_region
      %s25 = ssub.s32 512, 512
      %26 = vsyncadd [#allocation6], %s25
      %s27 = sshll.u32 [#allocation5], 4
      %s28 = int_to_ptr.vmem [resolvable:$true] %s27
      %33 = dma.hbm_to_vmem [thread:$0]  %s1, 512, %s28, [#allocation6], 128, 128, 8
    $region9: #{tpu_custom_call.1} parent=1 // pred_fallthru
      _
    // Predicated region
    $region10: #{tpu_custom_call.1} parent=1 // pred_check
      _
    $region11: #{tpu_custom_call.1} parent=1 // pred_check_branch
      %35 = sbr.rel (0) target = $region13
    $region12: #{tpu_custom_call.1} parent=1 // pred_region
      %36 = dma.done [#allocation3], 512
    $region13: #{tpu_custom_call.1} parent=1 // pred_fallthru
      _
    // Predicated region
    $region14: #{tpu_custom_call.1} parent=1 // pred_check
      _
    $region15: #{tpu_custom_call.1} parent=1 // pred_check_branch
      %38 = sbr.rel (0) target = $region17
    $region16: #{tpu_custom_call.1} parent=1 // pred_region
      %39 = dma.done [#allocation6], 512
    $region17: #{tpu_custom_call.1} parent=1 // pred_fallthru
      _
    %p40 = scmp.eq.s32.totalorder 0, 0
    // Predicated region
    $region18: #{tpu_custom_call.1} parent=1 // pred_check
      %p41 = pneg %p40
    $region19: #{tpu_custom_call.1} parent=1 // pred_check_branch
      %43 = sbr.rel (%p41) target = $region21
    $region20: #{tpu_custom_call.1} parent=1 // pred_region
      %44 = vst [vmem:[#allocation7] sm:$0xff] 0.0
    $region21: #{tpu_custom_call.1} parent=1 // pred_fallthru
      _
    %v45 = vld [vmem:[#allocation2] sm:$0xff]
    %v46 = vld [vmem:[#allocation2 + $0x8] sm:$0xff]
    %v47 = vld [vmem:[#allocation2 + $0x10] sm:$0xff]
    %v48 = vld [vmem:[#allocation2 + $0x18] sm:$0xff]
    %v49 = vld [vmem:[#allocation5] sm:$0xff]
    %v50 = vld [vmem:[#allocation5 + $0x8] sm:$0xff]
    %v51 = vld [vmem:[#allocation5 + $0x10] sm:$0xff]
    %v52 = vld [vmem:[#allocation5 + $0x18] sm:$0xff]
    %v53 = vsub.f32 %v45, %v49
    %v54 = vsub.f32 %v46, %v50
    %v55 = vsub.f32 %v47, %v51
    %v56 = vsub.f32 %v48, %v52
    %v57 = vand.u32 2147483647, %v53
    %v58 = vand.u32 2147483647, %v54
    %v59 = vand.u32 2147483647, %v55
    %v60 = vand.u32 2147483647, %v56
    %v61 = vand.u32 2147483647, %v45
    %v62 = vand.u32 2147483647, %v46
    %v63 = vand.u32 2147483647, %v47
    %v64 = vand.u32 2147483647, %v48
    %v65 = vand.u32 2147483647, %v49
    %v66 = vand.u32 2147483647, %v50
    %v67 = vand.u32 2147483647, %v51
    %v68 = vand.u32 2147483647, %v52
    %v69 = vadd.f32 %v61, %v65
    %v70 = vadd.f32 %v62, %v66
    %v71 = vadd.f32 %v63, %v67
    %v72 = vadd.f32 %v64, %v68
    %v73 = vrcp.pop %v69
    %v74 = vmul.f32 %v57, %v73
    %v75 = vrcp.pop %v70
    %v76 = vmul.f32 %v58, %v75
    %v77 = vrcp.pop %v71
    %v78 = vmul.f32 %v59, %v77
    %v79 = vrcp.pop %v72
    %v80 = vmul.f32 %v60, %v79
    %vm81 = vweird.f32 %v74
    %vm82 = vweird.f32 %v76
    %vm83 = vweird.f32 %v78
    %vm84 = vweird.f32 %v80
    %vm85 = vmxor %vm81, 1
    %vm86 = vmxor %vm82, 1
    %vm87 = vmxor %vm83, 1
    %vm88 = vmxor %vm84, 1
    %v89 = vsel %vm85, %v74, 0.0
    %v90 = vsel %vm86, %v76, 0.0
    %v91 = vsel %vm87, %v78, 0.0
    %v92 = vsel %vm88, %v80, 0.0
    %v93 = vld [vmem:[#allocation7] sm:$0xff]
    %v94 = vadd.f32 %v89, %v90
    %v95 = vadd.f32 %v94, %v91
    %v96 = vadd.f32 %v95, %v92
    %v97 = vadd.f32 %v93, %v96
    %98 = vst [vmem:[#allocation7] sm:$0xff] %v97
    // Predicated region
    $region22: #{tpu_custom_call.1} parent=1 // pred_check
      _
    $region23: #{tpu_custom_call.1} parent=1 // pred_check_branch
      %100 = sbr.rel (0) target = $region25
    $region24: #{tpu_custom_call.1} parent=1 // pred_region
      %s102 = ssub.s32 128, 128
      %103 = vsyncadd [#allocation4], %s102
      %s105 = sshll.u32 [#allocation7], 4
      %s106 = int_to_ptr.vmem [resolvable:$true] %s105
      %108 = dma.vmem_to_hbm [thread:$0]  %s106, 128, %s2, [#allocation4]
    $region25: #{tpu_custom_call.1} parent=1 // pred_fallthru
      _
    // Predicated region
    $region26: #{tpu_custom_call.1} parent=1 // pred_check
      _
    $region27: #{tpu_custom_call.1} parent=1 // pred_check_branch
      %110 = sbr.rel (0) target = $region29
    $region28: #{tpu_custom_call.1} parent=1 // pred_region
      %111 = dma.done [#allocation4], 128
    $region29: #{tpu_custom_call.1} parent=1 // pred_fallthru
      _
    %112 = vsyncpa [#allocation3], 1
    %113 = vsyncpa [#allocation6], 1
    %114 = vsyncpa [#allocation4], 1

</llo_original>
